<compile_context>
chip_gen: v7x
topology: tpu7x:2x2x1
jax: 0.10.0
libtpu: 0.0.40
codegen_flags: <defaults>
</compile_context>

<pallas_src>
import functools

import jax
import jax.numpy as jnp
from jax.experimental import pallas as pl
from jax.experimental.pallas import tpu as pltpu

_LANES = 128          # vreg lane width (fast axis)
_SUBLANES = 8         # vreg sublane count (slow axis, f32)
_TILE_ROWS = 1024     # 1024 x 128 f32 = 512 KiB per block


def _identity_kernel(x_ref, o_ref):
    # Pure pass-through: full-vreg loads/stores, no in-kernel reshapes/slices
    # (keeps the single vst slot on v5e unmasked and at full density).
    o_ref[...] = x_ref[...]


@functools.partial(jax.jit, donate_argnums=())
def base_model_forward(x: jax.Array) -> jax.Array:
    """Identity pass-through matching the (abstract) BaseModel.forward contract:
    output has the same shape, dtype and values as the input."""
    orig_shape = x.shape
    orig_dtype = x.dtype
    total = x.size

    flat = x.reshape(-1)

    # Pad the flat array to a lane/sublane-dense multiple so the 2-D slab is
    # (rows, 128) with rows % 8 == 0 (small path) or rows % _TILE_ROWS == 0
    # (tiled path).  Pad is sliced off after the call.
    small = total <= _TILE_ROWS * _LANES
    chunk = (_SUBLANES * _LANES) if small else (_TILE_ROWS * _LANES)
    padded_total = ((total + chunk - 1) // chunk) * chunk
    if padded_total != total:
        flat = jnp.pad(flat, (0, padded_total - total))
    rows = padded_total // _LANES
    x2d = flat.reshape(rows, _LANES)

    if small:
        # Single invocation, no grid machinery: minimizes the fixed per-step
        # cost for toy-sized inputs.  Alias input 0 -> output 0 so the HBM
        # round-trip can be elided.
        out2d = pl.pallas_call(
            _identity_kernel,
            out_shape=jax.ShapeDtypeStruct((rows, _LANES), orig_dtype),
            in_specs=[pl.BlockSpec(memory_space=pltpu.MemorySpace.VMEM)],
            out_specs=pl.BlockSpec(memory_space=pltpu.MemorySpace.VMEM),
            input_output_aliases={0: 0},
        )(x2d)
    else:
        # Row-tiled, software-pipelined copy.  512 KiB f32 per block keeps the
        # double-buffered in+out footprint ~2 MiB (fits v7x's 64 MiB VMEM with
        # large headroom); the parallel grid axis lets v7x's two TensorCores
        # split the copy (neutral on v5e/v6e).
        n_tiles = rows // _TILE_ROWS
        out2d = pl.pallas_call(
            _identity_kernel,
            out_shape=jax.ShapeDtypeStruct((rows, _LANES), orig_dtype),
            grid=(n_tiles,),
            in_specs=[pl.BlockSpec((_TILE_ROWS, _LANES), lambda i: (i, 0))],
            out_specs=pl.BlockSpec((_TILE_ROWS, _LANES), lambda i: (i, 0)),
            compiler_params=pltpu.CompilerParams(
                dimension_semantics=("parallel",),
            ),
            input_output_aliases={0: 0},
        )(x2d)

    return out2d.reshape(-1)[:total].reshape(orig_shape)


if __name__ == "__main__":
    key = jax.random.PRNGKey(0)
    # Small NCHW input consistent with a vision-style module: (2, 4, 16, 16).
    x = jax.random.normal(key, (2, 4, 16, 16), dtype=jnp.float32)

    y = base_model_forward(x)
    y = jax.block_until_ready(y)

    # Identity semantics check (the base class forward defines no compute).
    assert y.shape == x.shape and y.dtype == x.dtype
    assert bool(jnp.allclose(y, x))

    # Exercise the tiled (large-input) path once as well.
    x_big = jax.random.normal(key, (512, 4096), dtype=jnp.float32)  # 8 MiB
    y_big = jax.block_until_ready(base_model_forward(x_big))
    assert y_big.shape == x_big.shape and bool(jnp.allclose(y_big, x_big))

    print("KERNEL_OK")
</pallas_src>

<mosaic_0001>
module attributes {stable_mosaic.version = 11 : i64} {
  func.func @_identity_kernel(%arg0: memref<16x128xf32, #tpu.memory_space<vmem>>, %arg1: memref<16x128xf32, #tpu.memory_space<vmem>>) attributes {dimension_semantics = [], scalar_prefetch = 0 : i64, scratch_operands = 0 : i64, tpu.core_type = #tpu.core_type<tc>} {
    %c0 = arith.constant 0 : index
    %c0_0 = arith.constant 0 : index
    %0 = vector.load %arg0[%c0, %c0_0] : memref<16x128xf32, #tpu.memory_space<vmem>>, vector<16x128xf32>
    %c0_1 = arith.constant 0 : index
    %c0_2 = arith.constant 0 : index
    %1 = vector.load %arg1[%c0_1, %c0_2] : memref<16x128xf32, #tpu.memory_space<vmem>>, vector<16x128xf32>
    tpu.vector_store %arg1[%c0_1, %c0_2], %0 {strides = array<i32>} : memref<16x128xf32, #tpu.memory_space<vmem>>, vector<16x128xf32>,
    return
  }
}

</mosaic_0001>

<llo_original>
// kernel: base_model_forward.1
$region0: #{base_model_forward.1}
  #allocation0 [shape = 'u32[]', space=smem, size = 0x4, offset = 0x4, fixed_abs, tag = 'smem constant byte address 0x4 - core index']
  #allocation1 [shape = 'u32[144,128]{1,0:T(1,128)}', space=vmem, size = 0x12000, scoped, tag = 'internal scratch']
  %s0 = inlined_call_operand.vmem [shape: f32[16,128], index: 0, kind: input, shape index: {}, may-alias: {0,1}]
  %s1 = inlined_call_operand.vmem [shape: f32[16,128], index: 1, kind: output, shape index: {}, may-alias: {0,1}]
  %s2 = sld [smem:[#allocation0]]
  $region14: #{base_model_forward.1} parent=0
    _
  %s4 = ssub.s32 1, %s2
  %s5 = scalar_select 0, %s4, %s2
  // Predicated region
  $region2: #{base_model_forward.1} parent=0 // pred_check
    _
  $region3: #{base_model_forward.1} parent=0 // pred_check_branch
    %7 = sbr.rel (0) target = $region5
  $region4: #{base_model_forward.1} parent=0 // pred_region
    _
  $region5: #{base_model_forward.1} parent=0 // pred_fallthru
    _
  %v8 = vld [vmem:[%s0] sm:$0xff]
  %v9 = vld [vmem:[%s0 + $0x8] sm:$0xff]
  %10 = vst [vmem:[%s1] sm:$0xff] %v8
  %11 = vst [vmem:[%s1 + $0x8] sm:$0xff] %v9
  // Predicated region
  $region6: #{base_model_forward.1} parent=0 // pred_check
    _
  $region7: #{base_model_forward.1} parent=0 // pred_check_branch
    %13 = sbr.rel (0) target = $region9
  $region8: #{base_model_forward.1} parent=0 // pred_region
    _
  $region9: #{base_model_forward.1} parent=0 // pred_fallthru
    _
  // Predicated region
  $region10: #{base_model_forward.1} parent=0 // pred_check
    _
  $region11: #{base_model_forward.1} parent=0 // pred_check_branch
    %15 = sbr.rel (0) target = $region13
  $region12: #{base_model_forward.1} parent=0 // pred_region
    _
  $region13: #{base_model_forward.1} parent=0 // pred_fallthru
    _

</llo_original>
